<compile_context>
chip_gen: v7x
topology: tpu7x:2x2x1
jax: 0.10.0
libtpu: 0.0.40
codegen_flags: <defaults>
</compile_context>

<pallas_src>
import jax
import jax.numpy as jnp
from jax.experimental import pallas as pl
from jax.experimental.pallas import tpu as pltpu


# ----------------------------- Pallas kernel -------------------------------

def _spatial_attention_kernel(x_ref, w3_ref, w5_ref, w7_ref, o_ref):
    # x_ref:  (C, L)        f32  (batch dim squeezed by BlockSpec)
    # w*_ref: (Cout, k*Cin) f32  (im2col-flattened Conv1d weights)
    # o_ref:  (C, L)        f32
    x = x_ref[...]
    L = x.shape[-1]

    def shifted(src, d):
        # src[:, l + d] with zero padding outside [0, L); shift rides the XLU.
        if d == 0:
            return src
        rolled = pltpu.roll(src, shift=(-d) % L, axis=1)
        lane = jax.lax.broadcasted_iota(jnp.int32, src.shape, 1)
        return jnp.where((lane + d >= 0) & (lane + d < L), rolled, 0.0)

    def conv1d(src, w_flat, k):
        # One im2col matmul: (Cout, k*Cin) @ (k*Cin, L) -> (Cout, L), L on lanes.
        pad = (k - 1) // 2
        stacked = jnp.concatenate(
            [shifted(src, d) for d in range(-pad, pad + 1)], axis=0)
        return jax.lax.dot_general(
            w_flat, stacked, (((1,), (0,)), ((), ())),
            preferred_element_type=jnp.float32)

    avg = conv1d(x, w3_ref[...], 3)                  # (C, L)
    mx = conv1d(x, w5_ref[...], 5)                   # (C, L)
    cat = jnp.concatenate([avg, mx], axis=0)         # (2C, L), stays in vregs
    c7 = conv1d(cat, w7_ref[...], 7)                 # (C, L)
    out = jax.nn.sigmoid(c7) * jnp.tanh(c7) + x      # gate (EUP) + residual
    o_ref[...] = out.astype(o_ref.dtype)


# ------------------------------ Wrapper -------------------------------------

def _flatten_conv1d_weight(w):
    # PyTorch Conv1d weight (Cout, Cin, K) -> (Cout, K*Cin) matching the
    # in-kernel tap stacking order (tap-major, channel-minor).
    cout, cin, k = w.shape
    return jnp.transpose(w, (0, 2, 1)).reshape(cout, k * cin)


def spatial_attention(x, w3, w5, w7):
    """x: (B, C, L) f32.  w3: (C, C, 3), w5: (C, C, 5), w7: (C, 2C, 7)."""
    B, C, L = x.shape
    w3f = _flatten_conv1d_weight(w3)
    w5f = _flatten_conv1d_weight(w5)
    w7f = _flatten_conv1d_weight(w7)

    flops = int(2 * B * L * (C * 3 * C + C * 5 * C + C * 7 * 2 * C))
    bytes_accessed = int(4 * (2 * B * C * L + w3f.size + w5f.size + w7f.size))

    return pl.pallas_call(
        _spatial_attention_kernel,
        out_shape=jax.ShapeDtypeStruct((B, C, L), x.dtype),
        grid=(B,),
        in_specs=[
            pl.BlockSpec((None, C, L), lambda b: (b, 0, 0)),   # batch squeezed
            pl.BlockSpec(w3f.shape, lambda b: (0, 0)),
            pl.BlockSpec(w5f.shape, lambda b: (0, 0)),
            pl.BlockSpec(w7f.shape, lambda b: (0, 0)),
        ],
        out_specs=pl.BlockSpec((None, C, L), lambda b: (b, 0, 0)),
        compiler_params=pltpu.CompilerParams(
            dimension_semantics=("parallel",)),
        cost_estimate=pl.CostEstimate(
            flops=flops,
            transcendentals=int(2 * B * C * L),
            bytes_accessed=bytes_accessed),
    )(x, w3f, w5f, w7f)


# ------------------------------ Reference -----------------------------------

def reference_forward(x, w3, w5, w7):
    dn = ("NCH", "OIH", "NCH")

    def conv(v, w, p):
        return jax.lax.conv_general_dilated(
            v, w, window_strides=(1,), padding=[(p, p)],
            dimension_numbers=dn, precision=jax.lax.Precision.HIGHEST)

    avg = conv(x, w3, 1)
    mx = conv(x, w5, 2)
    cat = jnp.concatenate([avg, mx], axis=1)
    c7 = conv(cat, w7, 3)
    return jax.nn.sigmoid(c7) * jnp.tanh(c7) + x


# -------------------------------- Main ---------------------------------------

if __name__ == "__main__":
    key = jax.random.PRNGKey(0)
    kx, k3, k5, k7 = jax.random.split(key, 4)

    B, C, L = 2, 4, 128   # in_channels == out_channels == 4 (residual add)

    x = jax.random.normal(kx, (B, C, L), jnp.float32)
    w3 = jax.random.normal(k3, (C, C, 3), jnp.float32) * (1.0 / (C * 3)) ** 0.5
    w5 = jax.random.normal(k5, (C, C, 5), jnp.float32) * (1.0 / (C * 5)) ** 0.5
    w7 = jax.random.normal(k7, (C, 2 * C, 7), jnp.float32) * (1.0 / (2 * C * 7)) ** 0.5

    out = jax.block_until_ready(spatial_attention(x, w3, w5, w7))
    ref = jax.block_until_ready(reference_forward(x, w3, w5, w7))

    assert out.shape == (B, C, L)
    assert jnp.allclose(out, ref, atol=1e-4, rtol=1e-4), float(
        jnp.max(jnp.abs(out - ref)))

    print("KERNEL_OK")
</pallas_src>

<mosaic_0001>
module attributes {stable_mosaic.version = 11 : i64} {
  func.func @_spatial_attention_kernel(%arg0: i32, %arg1: memref<1x4x128xf32, #tpu.memory_space<vmem>>, %arg2: memref<4x12xf32, #tpu.memory_space<vmem>>, %arg3: memref<4x20xf32, #tpu.memory_space<vmem>>, %arg4: memref<4x56xf32, #tpu.memory_space<vmem>>, %arg5: memref<1x4x128xf32, #tpu.memory_space<vmem>>) attributes {dimension_semantics = [#tpu.dimension_semantics<parallel>], iteration_bounds = array<i64: 2>, scalar_prefetch = 0 : i64, scratch_operands = 0 : i64, tpu.core_type = #tpu.core_type<tc>, window_params = [{transform_indices = @transform_0, window_bounds = array<i64: 1, 4, 128>}, {pipeline_mode = #tpu.pipeline_mode<synchronous>, transform_indices = @transform_1, window_bounds = array<i64: 4, 12>}, {pipeline_mode = #tpu.pipeline_mode<synchronous>, transform_indices = @transform_2, window_bounds = array<i64: 4, 20>}, {pipeline_mode = #tpu.pipeline_mode<synchronous>, transform_indices = @transform_3, window_bounds = array<i64: 4, 56>}, {transform_indices = @transform_4, window_bounds = array<i64: 1, 4, 128>}]} {
    %c0 = arith.constant 0 : index
    %c0_0 = arith.constant 0 : index
    %c0_1 = arith.constant 0 : index
    %0 = vector.load %arg1[%c0, %c0_0, %c0_1] : memref<1x4x128xf32, #tpu.memory_space<vmem>>, vector<1x4x128xf32>
    %1 = vector.shape_cast %0 : vector<1x4x128xf32> to vector<4x128xf32>
    %c0_2 = arith.constant 0 : index
    %c0_3 = arith.constant 0 : index
    %2 = vector.load %arg2[%c0_2, %c0_3] : memref<4x12xf32, #tpu.memory_space<vmem>>, vector<4x12xf32>
    %c1_i32 = arith.constant 1 : i32
    %3 = tpu.dynamic_rotate %1 by %c1_i32 dim 1 : vector<4x128xf32>, i32 -> vector<4x128xf32>
    %4 = tpu.iota {dimensions = array<i32: 1>} : vector<4x128xi32>
    %c-1_i32 = arith.constant -1 : i32
    %5 = vector.broadcast %c-1_i32 : i32 to vector<4x128xi32>
    %6 = arith.addi %4, %5 : vector<4x128xi32>
    %c0_i32 = arith.constant 0 : i32
    %7 = vector.broadcast %c0_i32 : i32 to vector<4x128xi32>
    %8 = arith.cmpi sge, %6, %7 : vector<4x128xi32>
    %c-1_i32_4 = arith.constant -1 : i32
    %9 = vector.broadcast %c-1_i32_4 : i32 to vector<4x128xi32>
    %10 = arith.addi %4, %9 : vector<4x128xi32>
    %c128_i32 = arith.constant 128 : i32
    %11 = vector.broadcast %c128_i32 : i32 to vector<4x128xi32>
    %12 = arith.cmpi slt, %10, %11 : vector<4x128xi32>
    %13 = arith.andi %8, %12 : vector<4x128xi1>
    %cst = arith.constant 0.000000e+00 : f32
    %14 = vector.broadcast %cst : f32 to vector<4x128xf32>
    %15 = arith.select %13, %3, %14 : vector<4x128xi1>, vector<4x128xf32>
    %c127_i32 = arith.constant 127 : i32
    %16 = tpu.dynamic_rotate %1 by %c127_i32 dim 1 : vector<4x128xf32>, i32 -> vector<4x128xf32>
    %17 = tpu.iota {dimensions = array<i32: 1>} : vector<4x128xi32>
    %c1_i32_5 = arith.constant 1 : i32
    %18 = vector.broadcast %c1_i32_5 : i32 to vector<4x128xi32>
    %19 = arith.addi %17, %18 : vector<4x128xi32>
    %c0_i32_6 = arith.constant 0 : i32
    %20 = vector.broadcast %c0_i32_6 : i32 to vector<4x128xi32>
    %21 = arith.cmpi sge, %19, %20 : vector<4x128xi32>
    %c1_i32_7 = arith.constant 1 : i32
    %22 = vector.broadcast %c1_i32_7 : i32 to vector<4x128xi32>
    %23 = arith.addi %17, %22 : vector<4x128xi32>
    %c128_i32_8 = arith.constant 128 : i32
    %24 = vector.broadcast %c128_i32_8 : i32 to vector<4x128xi32>
    %25 = arith.cmpi slt, %23, %24 : vector<4x128xi32>
    %26 = arith.andi %21, %25 : vector<4x128xi1>
    %cst_9 = arith.constant 0.000000e+00 : f32
    %27 = vector.broadcast %cst_9 : f32 to vector<4x128xf32>
    %28 = arith.select %26, %16, %27 : vector<4x128xi1>, vector<4x128xf32>
    %29 = tpu.concatenate %15, %1, %28 in 0 : vector<4x128xf32>, vector<4x128xf32>, vector<4x128xf32> -> vector<12x128xf32>
    %cst_10 = arith.constant dense<0.000000e+00> : vector<4x128xf32>
    %30 = tpu.matmul %2, %29, %cst_10 {dimension_numbers = #tpu.dot_dimension_numbers<[1], [0], [0], [1], [0, 0, 1, 1], [], []>} : vector<4x12xf32>, vector<12x128xf32>, vector<4x128xf32> -> vector<4x128xf32>
    %c0_11 = arith.constant 0 : index
    %c0_12 = arith.constant 0 : index
    %31 = vector.load %arg3[%c0_11, %c0_12] : memref<4x20xf32, #tpu.memory_space<vmem>>, vector<4x20xf32>
    %c2_i32 = arith.constant 2 : i32
    %32 = tpu.dynamic_rotate %1 by %c2_i32 dim 1 : vector<4x128xf32>, i32 -> vector<4x128xf32>
    %33 = tpu.iota {dimensions = array<i32: 1>} : vector<4x128xi32>
    %c-2_i32 = arith.constant -2 : i32
    %34 = vector.broadcast %c-2_i32 : i32 to vector<4x128xi32>
    %35 = arith.addi %33, %34 : vector<4x128xi32>
    %c0_i32_13 = arith.constant 0 : i32
    %36 = vector.broadcast %c0_i32_13 : i32 to vector<4x128xi32>
    %37 = arith.cmpi sge, %35, %36 : vector<4x128xi32>
    %c-2_i32_14 = arith.constant -2 : i32
    %38 = vector.broadcast %c-2_i32_14 : i32 to vector<4x128xi32>
    %39 = arith.addi %33, %38 : vector<4x128xi32>
    %c128_i32_15 = arith.constant 128 : i32
    %40 = vector.broadcast %c128_i32_15 : i32 to vector<4x128xi32>
    %41 = arith.cmpi slt, %39, %40 : vector<4x128xi32>
    %42 = arith.andi %37, %41 : vector<4x128xi1>
    %cst_16 = arith.constant 0.000000e+00 : f32
    %43 = vector.broadcast %cst_16 : f32 to vector<4x128xf32>
    %44 = arith.select %42, %32, %43 : vector<4x128xi1>, vector<4x128xf32>
    %c1_i32_17 = arith.constant 1 : i32
    %45 = tpu.dynamic_rotate %1 by %c1_i32_17 dim 1 : vector<4x128xf32>, i32 -> vector<4x128xf32>
    %46 = tpu.iota {dimensions = array<i32: 1>} : vector<4x128xi32>
    %c-1_i32_18 = arith.constant -1 : i32
    %47 = vector.broadcast %c-1_i32_18 : i32 to vector<4x128xi32>
    %48 = arith.addi %46, %47 : vector<4x128xi32>
    %c0_i32_19 = arith.constant 0 : i32
    %49 = vector.broadcast %c0_i32_19 : i32 to vector<4x128xi32>
    %50 = arith.cmpi sge, %48, %49 : vector<4x128xi32>
    %c-1_i32_20 = arith.constant -1 : i32
    %51 = vector.broadcast %c-1_i32_20 : i32 to vector<4x128xi32>
    %52 = arith.addi %46, %51 : vector<4x128xi32>
    %c128_i32_21 = arith.constant 128 : i32
    %53 = vector.broadcast %c128_i32_21 : i32 to vector<4x128xi32>
    %54 = arith.cmpi slt, %52, %53 : vector<4x128xi32>
    %55 = arith.andi %50, %54 : vector<4x128xi1>
    %cst_22 = arith.constant 0.000000e+00 : f32
    %56 = vector.broadcast %cst_22 : f32 to vector<4x128xf32>
    %57 = arith.select %55, %45, %56 : vector<4x128xi1>, vector<4x128xf32>
    %c127_i32_23 = arith.constant 127 : i32
    %58 = tpu.dynamic_rotate %1 by %c127_i32_23 dim 1 : vector<4x128xf32>, i32 -> vector<4x128xf32>
    %59 = tpu.iota {dimensions = array<i32: 1>} : vector<4x128xi32>
    %c1_i32_24 = arith.constant 1 : i32
    %60 = vector.broadcast %c1_i32_24 : i32 to vector<4x128xi32>
    %61 = arith.addi %59, %60 : vector<4x128xi32>
    %c0_i32_25 = arith.constant 0 : i32
    %62 = vector.broadcast %c0_i32_25 : i32 to vector<4x128xi32>
    %63 = arith.cmpi sge, %61, %62 : vector<4x128xi32>
    %c1_i32_26 = arith.constant 1 : i32
    %64 = vector.broadcast %c1_i32_26 : i32 to vector<4x128xi32>
    %65 = arith.addi %59, %64 : vector<4x128xi32>
    %c128_i32_27 = arith.constant 128 : i32
    %66 = vector.broadcast %c128_i32_27 : i32 to vector<4x128xi32>
    %67 = arith.cmpi slt, %65, %66 : vector<4x128xi32>
    %68 = arith.andi %63, %67 : vector<4x128xi1>
    %cst_28 = arith.constant 0.000000e+00 : f32
    %69 = vector.broadcast %cst_28 : f32 to vector<4x128xf32>
    %70 = arith.select %68, %58, %69 : vector<4x128xi1>, vector<4x128xf32>
    %c126_i32 = arith.constant 126 : i32
    %71 = tpu.dynamic_rotate %1 by %c126_i32 dim 1 : vector<4x128xf32>, i32 -> vector<4x128xf32>
    %72 = tpu.iota {dimensions = array<i32: 1>} : vector<4x128xi32>
    %c2_i32_29 = arith.constant 2 : i32
    %73 = vector.broadcast %c2_i32_29 : i32 to vector<4x128xi32>
    %74 = arith.addi %72, %73 : vector<4x128xi32>
    %c0_i32_30 = arith.constant 0 : i32
    %75 = vector.broadcast %c0_i32_30 : i32 to vector<4x128xi32>
    %76 = arith.cmpi sge, %74, %75 : vector<4x128xi32>
    %c2_i32_31 = arith.constant 2 : i32
    %77 = vector.broadcast %c2_i32_31 : i32 to vector<4x128xi32>
    %78 = arith.addi %72, %77 : vector<4x128xi32>
    %c128_i32_32 = arith.constant 128 : i32
    %79 = vector.broadcast %c128_i32_32 : i32 to vector<4x128xi32>
    %80 = arith.cmpi slt, %78, %79 : vector<4x128xi32>
    %81 = arith.andi %76, %80 : vector<4x128xi1>
    %cst_33 = arith.constant 0.000000e+00 : f32
    %82 = vector.broadcast %cst_33 : f32 to vector<4x128xf32>
    %83 = arith.select %81, %71, %82 : vector<4x128xi1>, vector<4x128xf32>
    %84 = tpu.concatenate %44, %57, %1, %70, %83 in 0 : vector<4x128xf32>, vector<4x128xf32>, vector<4x128xf32>, vector<4x128xf32>, vector<4x128xf32> -> vector<20x128xf32>
    %cst_34 = arith.constant dense<0.000000e+00> : vector<4x128xf32>
    %85 = tpu.matmul %31, %84, %cst_34 {dimension_numbers = #tpu.dot_dimension_numbers<[1], [0], [0], [1], [0, 0, 1, 1], [], []>} : vector<4x20xf32>, vector<20x128xf32>, vector<4x128xf32> -> vector<4x128xf32>
    %86 = tpu.concatenate %30, %85 in 0 : vector<4x128xf32>, vector<4x128xf32> -> vector<8x128xf32>
    %c0_35 = arith.constant 0 : index
    %c0_36 = arith.constant 0 : index
    %87 = vector.load %arg4[%c0_35, %c0_36] : memref<4x56xf32, #tpu.memory_space<vmem>>, vector<4x56xf32>
    %c3_i32 = arith.constant 3 : i32
    %88 = tpu.dynamic_rotate %86 by %c3_i32 dim 1 : vector<8x128xf32>, i32 -> vector<8x128xf32>
    %89 = tpu.iota {dimensions = array<i32: 1>} : vector<8x128xi32>
    %c-3_i32 = arith.constant -3 : i32
    %90 = vector.broadcast %c-3_i32 : i32 to vector<8x128xi32>
    %91 = arith.addi %89, %90 : vector<8x128xi32>
    %c0_i32_37 = arith.constant 0 : i32
    %92 = vector.broadcast %c0_i32_37 : i32 to vector<8x128xi32>
    %93 = arith.cmpi sge, %91, %92 : vector<8x128xi32>
    %c-3_i32_38 = arith.constant -3 : i32
    %94 = vector.broadcast %c-3_i32_38 : i32 to vector<8x128xi32>
    %95 = arith.addi %89, %94 : vector<8x128xi32>
    %c128_i32_39 = arith.constant 128 : i32
    %96 = vector.broadcast %c128_i32_39 : i32 to vector<8x128xi32>
    %97 = arith.cmpi slt, %95, %96 : vector<8x128xi32>
    %98 = arith.andi %93, %97 : vector<8x128xi1>
    %cst_40 = arith.constant 0.000000e+00 : f32
    %99 = vector.broadcast %cst_40 : f32 to vector<8x128xf32>
    %100 = arith.select %98, %88, %99 : vector<8x128xi1>, vector<8x128xf32>
    %c2_i32_41 = arith.constant 2 : i32
    %101 = tpu.dynamic_rotate %86 by %c2_i32_41 dim 1 : vector<8x128xf32>, i32 -> vector<8x128xf32>
    %102 = tpu.iota {dimensions = array<i32: 1>} : vector<8x128xi32>
    %c-2_i32_42 = arith.constant -2 : i32
    %103 = vector.broadcast %c-2_i32_42 : i32 to vector<8x128xi32>
    %104 = arith.addi %102, %103 : vector<8x128xi32>
    %c0_i32_43 = arith.constant 0 : i32
    %105 = vector.broadcast %c0_i32_43 : i32 to vector<8x128xi32>
    %106 = arith.cmpi sge, %104, %105 : vector<8x128xi32>
    %c-2_i32_44 = arith.constant -2 : i32
    %107 = vector.broadcast %c-2_i32_44 : i32 to vector<8x128xi32>
    %108 = arith.addi %102, %107 : vector<8x128xi32>
    %c128_i32_45 = arith.constant 128 : i32
    %109 = vector.broadcast %c128_i32_45 : i32 to vector<8x128xi32>
    %110 = arith.cmpi slt, %108, %109 : vector<8x128xi32>
    %111 = arith.andi %106, %110 : vector<8x128xi1>
    %cst_46 = arith.constant 0.000000e+00 : f32
    %112 = vector.broadcast %cst_46 : f32 to vector<8x128xf32>
    %113 = arith.select %111, %101, %112 : vector<8x128xi1>, vector<8x128xf32>
    %c1_i32_47 = arith.constant 1 : i32
    %114 = tpu.dynamic_rotate %86 by %c1_i32_47 dim 1 : vector<8x128xf32>, i32 -> vector<8x128xf32>
    %115 = tpu.iota {dimensions = array<i32: 1>} : vector<8x128xi32>
    %c-1_i32_48 = arith.constant -1 : i32
    %116 = vector.broadcast %c-1_i32_48 : i32 to vector<8x128xi32>
    %117 = arith.addi %115, %116 : vector<8x128xi32>
    %c0_i32_49 = arith.constant 0 : i32
    %118 = vector.broadcast %c0_i32_49 : i32 to vector<8x128xi32>
    %119 = arith.cmpi sge, %117, %118 : vector<8x128xi32>
    %c-1_i32_50 = arith.constant -1 : i32
    %120 = vector.broadcast %c-1_i32_50 : i32 to vector<8x128xi32>
    %121 = arith.addi %115, %120 : vector<8x128xi32>
    %c128_i32_51 = arith.constant 128 : i32
    %122 = vector.broadcast %c128_i32_51 : i32 to vector<8x128xi32>
    %123 = arith.cmpi slt, %121, %122 : vector<8x128xi32>
    %124 = arith.andi %119, %123 : vector<8x128xi1>
    %cst_52 = arith.constant 0.000000e+00 : f32
    %125 = vector.broadcast %cst_52 : f32 to vector<8x128xf32>
    %126 = arith.select %124, %114, %125 : vector<8x128xi1>, vector<8x128xf32>
    %c127_i32_53 = arith.constant 127 : i32
    %127 = tpu.dynamic_rotate %86 by %c127_i32_53 dim 1 : vector<8x128xf32>, i32 -> vector<8x128xf32>
    %128 = tpu.iota {dimensions = array<i32: 1>} : vector<8x128xi32>
    %c1_i32_54 = arith.constant 1 : i32
    %129 = vector.broadcast %c1_i32_54 : i32 to vector<8x128xi32>
    %130 = arith.addi %128, %129 : vector<8x128xi32>
    %c0_i32_55 = arith.constant 0 : i32
    %131 = vector.broadcast %c0_i32_55 : i32 to vector<8x128xi32>
    %132 = arith.cmpi sge, %130, %131 : vector<8x128xi32>
    %c1_i32_56 = arith.constant 1 : i32
    %133 = vector.broadcast %c1_i32_56 : i32 to vector<8x128xi32>
    %134 = arith.addi %128, %133 : vector<8x128xi32>
    %c128_i32_57 = arith.constant 128 : i32
    %135 = vector.broadcast %c128_i32_57 : i32 to vector<8x128xi32>
    %136 = arith.cmpi slt, %134, %135 : vector<8x128xi32>
    %137 = arith.andi %132, %136 : vector<8x128xi1>
    %cst_58 = arith.constant 0.000000e+00 : f32
    %138 = vector.broadcast %cst_58 : f32 to vector<8x128xf32>
    %139 = arith.select %137, %127, %138 : vector<8x128xi1>, vector<8x128xf32>
    %c126_i32_59 = arith.constant 126 : i32
    %140 = tpu.dynamic_rotate %86 by %c126_i32_59 dim 1 : vector<8x128xf32>, i32 -> vector<8x128xf32>
    %141 = tpu.iota {dimensions = array<i32: 1>} : vector<8x128xi32>
    %c2_i32_60 = arith.constant 2 : i32
    %142 = vector.broadcast %c2_i32_60 : i32 to vector<8x128xi32>
    %143 = arith.addi %141, %142 : vector<8x128xi32>
    %c0_i32_61 = arith.constant 0 : i32
    %144 = vector.broadcast %c0_i32_61 : i32 to vector<8x128xi32>
    %145 = arith.cmpi sge, %143, %144 : vector<8x128xi32>
    %c2_i32_62 = arith.constant 2 : i32
    %146 = vector.broadcast %c2_i32_62 : i32 to vector<8x128xi32>
    %147 = arith.addi %141, %146 : vector<8x128xi32>
    %c128_i32_63 = arith.constant 128 : i32
    %148 = vector.broadcast %c128_i32_63 : i32 to vector<8x128xi32>
    %149 = arith.cmpi slt, %147, %148 : vector<8x128xi32>
    %150 = arith.andi %145, %149 : vector<8x128xi1>
    %cst_64 = arith.constant 0.000000e+00 : f32
    %151 = vector.broadcast %cst_64 : f32 to vector<8x128xf32>
    %152 = arith.select %150, %140, %151 : vector<8x128xi1>, vector<8x128xf32>
    %c125_i32 = arith.constant 125 : i32
    %153 = tpu.dynamic_rotate %86 by %c125_i32 dim 1 : vector<8x128xf32>, i32 -> vector<8x128xf32>
    %154 = tpu.iota {dimensions = array<i32: 1>} : vector<8x128xi32>
    %c3_i32_65 = arith.constant 3 : i32
    %155 = vector.broadcast %c3_i32_65 : i32 to vector<8x128xi32>
    %156 = arith.addi %154, %155 : vector<8x128xi32>
    %c0_i32_66 = arith.constant 0 : i32
    %157 = vector.broadcast %c0_i32_66 : i32 to vector<8x128xi32>
    %158 = arith.cmpi sge, %156, %157 : vector<8x128xi32>
    %c3_i32_67 = arith.constant 3 : i32
    %159 = vector.broadcast %c3_i32_67 : i32 to vector<8x128xi32>
    %160 = arith.addi %154, %159 : vector<8x128xi32>
    %c128_i32_68 = arith.constant 128 : i32
    %161 = vector.broadcast %c128_i32_68 : i32 to vector<8x128xi32>
    %162 = arith.cmpi slt, %160, %161 : vector<8x128xi32>
    %163 = arith.andi %158, %162 : vector<8x128xi1>
    %cst_69 = arith.constant 0.000000e+00 : f32
    %164 = vector.broadcast %cst_69 : f32 to vector<8x128xf32>
    %165 = arith.select %163, %153, %164 : vector<8x128xi1>, vector<8x128xf32>
    %166 = tpu.concatenate %100, %113, %126, %86, %139, %152, %165 in 0 : vector<8x128xf32>, vector<8x128xf32>, vector<8x128xf32>, vector<8x128xf32>, vector<8x128xf32>, vector<8x128xf32>, vector<8x128xf32> -> vector<56x128xf32>
    %cst_70 = arith.constant dense<0.000000e+00> : vector<4x128xf32>
    %167 = tpu.matmul %87, %166, %cst_70 {dimension_numbers = #tpu.dot_dimension_numbers<[1], [0], [0], [1], [0, 0, 1, 1], [], []>} : vector<4x56xf32>, vector<56x128xf32>, vector<4x128xf32> -> vector<4x128xf32>
    %168 = arith.negf %167 : vector<4x128xf32>
    %169 = math.exp %168 : vector<4x128xf32>
    %cst_71 = arith.constant 1.000000e+00 : f32
    %170 = vector.broadcast %cst_71 : f32 to vector<4x128xf32>
    %171 = arith.addf %170, %169 : vector<4x128xf32>
    %172 = arith.divf %170, %171 : vector<4x128xf32>
    %173 = math.tanh %167 : vector<4x128xf32>
    %174 = arith.mulf %172, %173 : vector<4x128xf32>
    %175 = arith.addf %174, %1 : vector<4x128xf32>
    %c0_72 = arith.constant 0 : index
    %c0_73 = arith.constant 0 : index
    %c0_74 = arith.constant 0 : index
    %176 = vector.load %arg5[%c0_72, %c0_73, %c0_74] : memref<1x4x128xf32, #tpu.memory_space<vmem>>, vector<1x4x128xf32>
    %177 = vector.shape_cast %176 : vector<1x4x128xf32> to vector<4x128xf32>
    %178 = vector.shape_cast %175 : vector<4x128xf32> to vector<1x4x128xf32>
    tpu.vector_store %arg5[%c0_72, %c0_73, %c0_74], %178 {strides = array<i32>} : memref<1x4x128xf32, #tpu.memory_space<vmem>>, vector<1x4x128xf32>,
    return
  }
  func.func @transform_0(%arg0: i32) -> (i32, i32, i32) {
    %c0_i32 = arith.constant 0 : i32
    %c0_i32_0 = arith.constant 0 : i32
    %c0_i32_1 = arith.constant 0 : i32
    return %arg0, %c0_i32, %c0_i32_0 : i32, i32, i32
  }
  func.func @transform_1(%arg0: i32) -> (i32, i32) {
    %c0_i32 = arith.constant 0 : i32
    %c0_i32_0 = arith.constant 0 : i32
    %c0_i32_1 = arith.constant 0 : i32
    return %c0_i32, %c0_i32_0 : i32, i32
  }
  func.func @transform_2(%arg0: i32) -> (i32, i32) {
    %c0_i32 = arith.constant 0 : i32
    %c0_i32_0 = arith.constant 0 : i32
    %c0_i32_1 = arith.constant 0 : i32
    return %c0_i32, %c0_i32_0 : i32, i32
  }
  func.func @transform_3(%arg0: i32) -> (i32, i32) {
    %c0_i32 = arith.constant 0 : i32
    %c0_i32_0 = arith.constant 0 : i32
    %c0_i32_1 = arith.constant 0 : i32
    return %c0_i32, %c0_i32_0 : i32, i32
  }
  func.func @transform_4(%arg0: i32) -> (i32, i32, i32) {
    %c0_i32 = arith.constant 0 : i32
    %c0_i32_0 = arith.constant 0 : i32
    %c0_i32_1 = arith.constant 0 : i32
    return %arg0, %c0_i32, %c0_i32_0 : i32, i32, i32
  }
}

</mosaic_0001>

<llo_original>
// kernel: tpu_custom_call.1
$region0: #{tpu_custom_call.1}
  #allocation0 [shape = 'u32[]', space=smem, size = 0x4, offset = 0x4, fixed_abs, tag = 'smem constant byte address 0x4 - core index']
  #allocation1 [shape = 'u32[144,128]{1,0:T(1,128)}', space=vmem, size = 0x12000, scoped, tag = 'internal scratch']
  %s0 = inlined_call_operand.hbm [shape: f32[2,4,128], index: 0, kind: input, shape index: {}]
  %s1 = inlined_call_operand.hbm [shape: f32[4,12], index: 1, kind: input, shape index: {}]
  %s2 = inlined_call_operand.vmem [shape: f32[4,20], index: 2, kind: input, shape index: {}]
  %s3 = inlined_call_operand.vmem [shape: f32[4,56], index: 3, kind: input, shape index: {}]
  %s4 = inlined_call_operand.hbm [shape: f32[2,4,128], index: 4, kind: output, shape index: {}]
  %s5 = sld [smem:[#allocation0]]
  $region57: #{tpu_custom_call.1} parent=0
    _
  %s7 = ssub.s32 1, %s5
  %s8 = scalar_select 0, %s7, %s5
  $region1: #{tpu_custom_call.1} parent=0
    #allocation2 [shape = 'u8[4096]{0}', space=vmem, size = 0x1000, scoped, tag = 'input window, operand 0']
    #allocation3 [shape = 's32[2]{0}', space=sflag, size = 0x8, scoped, tag = 'scoped memory for tpu_custom_call.1']
    #allocation4 [shape = 's32[2]{0}', space=sflag, size = 0x8, scoped, tag = 'scoped memory for tpu_custom_call.1']
    #allocation5 [shape = 'u8[2048]{0}', space=vmem, size = 0x800, scoped, tag = 'input window, operand 1, single buffered']
    #allocation6 [shape = 's32[1]{0}', space=sflag, size = 0x4, scoped, tag = 'scoped memory for tpu_custom_call.1']
    #allocation7 [shape = 'u8[4096]{0}', space=vmem, size = 0x1000, scoped, tag = 'output window, operand 0']
    %9 = vsyncpa [#allocation3], 0
    %s10 = scalar_lea.sflag [#allocation3], 1
    %11 = vsyncpa %s10, 0
    %12 = vsyncpa [#allocation6], 0
    %13 = vsyncpa [#allocation4], 0
    %s14 = scalar_lea.sflag [#allocation4], 1
    %15 = vsyncpa %s14, 0
    loop: start=0, step=1, limit=4
    $region2: #{tpu_custom_call.1} parent=1 // loop_pre_header
      _
    $region3: #{tpu_custom_call.1} parent=1 // loop_header
      %s17 = sphi 0, %s21
      %p18 = scmp.ge.s32.totalorder %s17, 4
      %s27 = sphi 0, %s29
      %s30 = sphi 0, %s27
      %s31 = sphi 0, %s30
      %s47 = sphi 0, %s31
      %s51 = sphi 0, %s51
      %s53 = sphi 0, %s51
      %s54 = sphi 0, %s53
      %s68 = sphi 0, %s54
      %s72 = sphi 0, %s72
      %s74 = sphi 0, %s72
      %s75 = sphi 0, %s74
      %s89 = sphi 0, %s75
      %s93 = sphi 0, %s93
      %s95 = sphi 0, %s93
      %s96 = sphi 0, %s95
      %s110 = sphi 0, %s96
      %s116 = sphi 0, %s118
      %s119 = sphi 0, %s116
      %s120 = sphi 0, %s119
      %s136 = sphi 0, %s120
    $region4: #{tpu_custom_call.1} parent=1 // loop_header_branch
      %20 = sbr.rel (%p18) target = $region8
    $region5: #{tpu_custom_call.1} parent=1 // loop_body
      %s22 = ssub.s32 %s17, 1
      %s23 = ssub.s32 %s17, 2
      %s24 = sadd.s32 %s17, 1
      %s25 = ssub.s32 %s17, %s24
      %p26 = scmp.eq.s32.totalorder %s25, 0
      %s28 = sadd.s32 %s27, 1
      %s29 = scalar_select %p26, %s27, %s28
      %p32 = pneg %p26
      %p33 = scmp.eq.s32.totalorder %s17, 1
      %p34 = por %p32, %p33
      %p35 = scmp.ne.s32.totalorder %s27, %s30
      %p36 = scmp.eq.s32.totalorder %s17, 0
      %p37 = por %p35, %p36
      %p38 = scmp.ne.s32.totalorder %s27, %s30
      %p39 = scmp.eq.s32.totalorder %s22, 1
      %p40 = por %p38, %p39
      %p41 = scmp.ne.s32.totalorder %s30, %s31
      %p42 = scmp.eq.s32.totalorder %s22, 0
      %p43 = por %p41, %p42
      %p44 = scmp.ne.s32.totalorder %s30, %s31
      %p45 = scmp.eq.s32.totalorder %s23, 1
      %p46 = por %p44, %p45
      %p48 = scmp.ne.s32.totalorder %s31, %s47
      %p49 = scmp.eq.s32.totalorder %s23, 0
      %p50 = por %p48, %p49
      %s52 = sadd.s32 %s51, 1
      %p55 = scmp.eq.s32.totalorder %s17, 1
      %p56 = scmp.ne.s32.totalorder %s51, %s53
      %p57 = scmp.eq.s32.totalorder %s17, 0
      %p58 = por %p56, %p57
      %p59 = scmp.ne.s32.totalorder %s51, %s53
      %p60 = scmp.eq.s32.totalorder %s22, 1
      %p61 = por %p59, %p60
      %p62 = scmp.ne.s32.totalorder %s53, %s54
      %p63 = scmp.eq.s32.totalorder %s22, 0
      %p64 = por %p62, %p63
      %p65 = scmp.ne.s32.totalorder %s53, %s54
      %p66 = scmp.eq.s32.totalorder %s23, 1
      %p67 = por %p65, %p66
      %p69 = scmp.ne.s32.totalorder %s54, %s68
      %p70 = scmp.eq.s32.totalorder %s23, 0
      %p71 = por %p69, %p70
      %s73 = sadd.s32 %s72, 1
      %p76 = scmp.eq.s32.totalorder %s17, 1
      %p77 = scmp.ne.s32.totalorder %s72, %s74
      %p78 = scmp.eq.s32.totalorder %s17, 0
      %p79 = por %p77, %p78
      %p80 = scmp.ne.s32.totalorder %s72, %s74
      %p81 = scmp.eq.s32.totalorder %s22, 1
      %p82 = por %p80, %p81
      %p83 = scmp.ne.s32.totalorder %s74, %s75
      %p84 = scmp.eq.s32.totalorder %s22, 0
      %p85 = por %p83, %p84
      %p86 = scmp.ne.s32.totalorder %s74, %s75
      %p87 = scmp.eq.s32.totalorder %s23, 1
      %p88 = por %p86, %p87
      %p90 = scmp.ne.s32.totalorder %s75, %s89
      %p91 = scmp.eq.s32.totalorder %s23, 0
      %p92 = por %p90, %p91
      %s94 = sadd.s32 %s93, 1
      %p97 = scmp.eq.s32.totalorder %s17, 1
      %p98 = scmp.ne.s32.totalorder %s93, %s95
      %p99 = scmp.eq.s32.totalorder %s17, 0
      %p100 = por %p98, %p99
      %p101 = scmp.ne.s32.totalorder %s93, %s95
      %p102 = scmp.eq.s32.totalorder %s22, 1
      %p103 = por %p101, %p102
      %p104 = scmp.ne.s32.totalorder %s95, %s96
      %p105 = scmp.eq.s32.totalorder %s22, 0
      %p106 = por %p104, %p105
      %p107 = scmp.ne.s32.totalorder %s95, %s96
      %p108 = scmp.eq.s32.totalorder %s23, 1
      %p109 = por %p107, %p108
      %p111 = scmp.ne.s32.totalorder %s96, %s110
      %p112 = scmp.eq.s32.totalorder %s23, 0
      %p113 = por %p111, %p112
      %s114 = ssub.s32 %s17, %s24
      %p115 = scmp.eq.s32.totalorder %s114, 0
      %s117 = sadd.s32 %s116, 1
      %s118 = scalar_select %p115, %s116, %s117
      %p121 = pneg %p115
      %p122 = scmp.eq.s32.totalorder %s17, 1
      %p123 = por %p121, %p122
      %p124 = scmp.ne.s32.totalorder %s116, %s119
      %p125 = scmp.eq.s32.totalorder %s17, 0
      %p126 = por %p124, %p125
      %p127 = scmp.ne.s32.totalorder %s116, %s119
      %p128 = scmp.eq.s32.totalorder %s22, 1
      %p129 = por %p127, %p128
      %p130 = scmp.ne.s32.totalorder %s119, %s120
      %p131 = scmp.eq.s32.totalorder %s22, 0
      %p132 = por %p130, %p131
      %p133 = scmp.ne.s32.totalorder %s119, %s120
      %p134 = scmp.eq.s32.totalorder %s23, 1
      %p135 = por %p133, %p134
      %p137 = scmp.ne.s32.totalorder %s120, %s136
      %p138 = scmp.eq.s32.totalorder %s23, 0
      %p139 = por %p137, %p138
      %p140 = scmp.le.s32.totalorder 1, %s17
      %p141 = scmp.lt.s32.totalorder %s17, 3
      %p142 = pnand %p140, %p141
      %p143 = pneg %p142
      // Predicated region
      $region9: #{tpu_custom_call.1} parent=5 // pred_check
        _
      $region10: #{tpu_custom_call.1} parent=5 // pred_check_branch
        %145 = sbr.rel (%p142) target = $region12
      $region11: #{tpu_custom_call.1} parent=5 // pred_region
        %s146 = ssub.s32 %s17, 1
        // Predicated region
        $region13: #{tpu_custom_call.1} parent=11 // pred_check
          %p147 = pneg %p64
        $region14: #{tpu_custom_call.1} parent=11 // pred_check_branch
          %149 = sbr.rel (%p147) target = $region16
        $region15: #{tpu_custom_call.1} parent=11 // pred_region
          %s151 = ssub.s32 64, 64
          %152 = vsyncadd [#allocation6], %s151
          %s154 = sshll.u32 [#allocation5], 4
          %s155 = int_to_ptr.vmem [resolvable:$true] %s154
          %157 = dma.hbm_to_vmem [thread:$0]  %s1, 64, %s155, [#allocation6]
        $region16: #{tpu_custom_call.1} parent=11 // pred_fallthru
          _
        // Predicated region
        $region17: #{tpu_custom_call.1} parent=11 // pred_check
          %p158 = pneg %p85
        $region18: #{tpu_custom_call.1} parent=11 // pred_check_branch
          %160 = sbr.rel (%p158) target = $region20
        $region19: #{tpu_custom_call.1} parent=11 // pred_region
          _
        $region20: #{tpu_custom_call.1} parent=11 // pred_fallthru
          _
        // Predicated region
        $region21: #{tpu_custom_call.1} parent=11 // pred_check
          %p161 = pneg %p106
        $region22: #{tpu_custom_call.1} parent=11 // pred_check_branch
          %163 = sbr.rel (%p161) target = $region24
        $region23: #{tpu_custom_call.1} parent=11 // pred_region
          _
        $region24: #{tpu_custom_call.1} parent=11 // pred_fallthru
          _
      $region12: #{tpu_custom_call.1} parent=5 // pred_fallthru
        _
      %p164 = scmp.lt.s32.totalorder %s17, 2
      // Predicated region
      $region25: #{tpu_custom_call.1} parent=5 // pred_check
        %p165 = pneg %p164
      $region26: #{tpu_custom_call.1} parent=5 // pred_check_branch
        %167 = sbr.rel (%p165) target = $region28
      $region27: #{tpu_custom_call.1} parent=5 // pred_region
        // Predicated region
        $region29: #{tpu_custom_call.1} parent=27 // pred_check
          %p168 = pneg %p37
        $region30: #{tpu_custom_call.1} parent=27 // pred_check_branch
          %170 = sbr.rel (%p168) target = $region32
        $region31: #{tpu_custom_call.1} parent=27 // pred_region
          %s171 = sand.u32 %s27, 1
          %s172 = scalar_lea.sflag [#allocation3], %s171
          %s173 = sand.u32 %s27, 1
          %s174 = smul.addr %s173, 4
          %s175 = scalar_lea.vmem [#allocation2], %s174
          %s177 = ssub.s32 64, 64
          %178 = vsyncadd %s172, %s177
          %s179 = smul.addr %s17, 64
          %s180 = scalar_lea.hbm %s0, %s179
          %s182 = sshll.u32 %s175, 4
          %s183 = int_to_ptr.vmem [resolvable:$true] %s182
          %185 = dma.hbm_to_vmem [thread:$0]  %s180, 64, %s183, %s172
        $region32: #{tpu_custom_call.1} parent=27 // pred_fallthru
          _
      $region28: #{tpu_custom_call.1} parent=5 // pred_fallthru
        _
      %p186 = scmp.le.s32.totalorder 1, %s17
      %p187 = scmp.lt.s32.totalorder %s17, 3
      %p188 = pnand %p186, %p187
      %p189 = pneg %p188
      // Predicated region
      $region33: #{tpu_custom_call.1} parent=5 // pred_check
        _
      $region34: #{tpu_custom_call.1} parent=5 // pred_check_branch
        %191 = sbr.rel (%p188) target = $region36
      $region35: #{tpu_custom_call.1} parent=5 // pred_region
        %s192 = ssub.s32 %s17, 1
        %s193 = sand.u32 %s30, 1
        %s194 = scalar_lea.sflag [#allocation3], %s193
        %s195 = sand.u32 %s30, 1
        %s196 = smul.addr %s195, 4
        %s197 = scalar_lea.vmem [#allocation2], %s196
        // Predicated region
        $region37: #{tpu_custom_call.1} parent=35 // pred_check
          %p198 = pneg %p43
        $region38: #{tpu_custom_call.1} parent=35 // pred_check_branch
          %200 = sbr.rel (%p198) target = $region40
        $region39: #{tpu_custom_call.1} parent=35 // pred_region
          %201 = dma.done %s194, 64
        $region40: #{tpu_custom_call.1} parent=35 // pred_fallthru
          _
        // Predicated region
        $region41: #{tpu_custom_call.1} parent=35 // pred_check
          %p202 = pneg %p64
        $region42: #{tpu_custom_call.1} parent=35 // pred_check_branch
          %204 = sbr.rel (%p202) target = $region44
        $region43: #{tpu_custom_call.1} parent=35 // pred_region
          %205 = dma.done [#allocation6], 64
        $region44: #{tpu_custom_call.1} parent=35 // pred_fallthru
          _
        %s206 = sand.u32 %s30, 1
        %s207 = scalar_lea.sflag [#allocation3], %s206
        %s208 = sand.u32 %s30, 1
        %s209 = smul.addr %s208, 4
        %s210 = scalar_lea.vmem [#allocation2], %s209
        %p211 = pneg %p43
        %p212 = pneg %p40
        %p213 = pneg %p64
        %p214 = pneg %p61
        %p215 = pneg %p85
        %p216 = pneg %p82
        %p217 = pneg %p106
        %p218 = pneg %p103
        %p219 = pneg %p132
        %p220 = pneg %p129
        %s221 = sand.u32 %s119, 1
        %s222 = scalar_lea.sflag [#allocation4], %s221
        %s223 = sand.u32 %s119, 1
        %s224 = smul.addr %s223, 4
        %s225 = scalar_lea.vmem [#allocation7], %s224
        %v226 = vld [vmem:[%s197] sm:$0xf]
        %v227 = vld [vmem:[#allocation5] sm:$0xf]
        %228 = vrot.lane.b32.xlu0 %v226, 1
        %v229 = vpop.permute.xlu0 %228
        %v230 = vlaneseq
        %v231 = vand.u32 %v230, 127
        %v232 = vadd.s32 %v231, 4294967295
        %vm233 = vcmp.ge.s32.totalorder %v232, 0
        %vm234 = vcmp.lt.s32.totalorder %v232, 128
        %vm235 = vmand %vm233, %vm234
        %v236 = vsel %vm235, %v229, 0.0
        %237 = vrot.lane.b32.xlu0 %v226, 127
        %v238 = vpop.permute.xlu0 %237
        %v239 = vadd.s32 %v231, 1
        %vm240 = vcmp.ge.s32.totalorder %v239, 0
        %vm241 = vcmp.lt.s32.totalorder %v239, 128
        %vm242 = vmand %vm240, %vm241
        %v243 = vsel %vm242, %v238, 0.0
        %v245 = vrot.slane %v226, 4
        %vm247 = vcmask 1043456
        %v248 = vsel %vm247, %v236, %v245
        %vm249 = vcmask 97280
        %v251 = vsel %vm249, %v227, 0
        %v254 = vsel %vm247, %v243, 0
        %256 = vmatprep.subr.mxu0 0.0
        %257 = vmatpush1.msra.mxu0 %v248
        %258 = vmatprep.subr.mxu0 0.0
        %259 = vmatpush1.msra.mxu0 %v254
        %260 = vmatprep.subr.mxu0 0.0
        %261 = vmatpush1.msra.mxu0 0.0
        %262 = vmatprep.subr.mxu0 0.0
        %263 = vmatpush1.msra.mxu0 0.0
        %264 = vmatprep.subr.mxu0 0.0
        %265 = vmatpush1.msra.mxu0 0.0
        %266 = vmatprep.subr.mxu0 0.0
        %267 = vmatpush1.msra.mxu0 0.0
        %268 = vmatprep.subr.mxu0 0.0
        %269 = vmatpush1.msra.mxu0 0.0
        %270 = vmatprep.subr.mxu0 0.0
        %271 = vmatpush1.msra.mxu0 0.0
        %272 = vmatprep.subr.mxu0 0.0
        %273 = vmatpush1.msra.mxu0 0.0
        %274 = vmatprep.subr.mxu0 0.0
        %275 = vmatpush1.msra.mxu0 0.0
        %276 = vmatprep.subr.mxu0 0.0
        %277 = vmatpush1.msra.mxu0 0.0
        %278 = vmatprep.subr.mxu0 0.0
        %279 = vmatpush1.msra.mxu0 0.0
        %280 = vmatprep.subr.mxu0 0.0
        %281 = vmatpush1.msra.mxu0 0.0
        %282 = vmatprep.subr.mxu0 0.0
        %283 = vmatpush1.msra.mxu0 0.0
        %284 = vmatprep.subr.mxu0 0.0
        %285 = vmatpush1.msra.mxu0 0.0
        %286 = vmatprep.subr.mxu0 0.0
        %287 = vmatpush1.msra.mxu0 0.0
        %288 = vmatprep.subr.mxu0 0.0
        %289 = vmatpush1.msra.mxu0 0.0
        %290 = vmatprep.subr.mxu0 0.0
        %291 = vmatpush1.msra.mxu0 0.0
        %292 = vmatprep.subr.mxu0 0.0
        %293 = vmatpush1.msra.mxu0 0.0
        %294 = vmatprep.subr.mxu0 0.0
        %295 = vmatpush1.msra.mxu0 0.0
        %296 = vmatprep.subr.mxu0 0.0
        %297 = vmatpush1.msra.mxu0 0.0
        %298 = vmatprep.subr.mxu0 0.0
        %299 = vmatpush1.msra.mxu0 0.0
        %300 = vmatprep.subr.mxu0 0.0
        %301 = vmatpush1.msra.mxu0 0.0
        %302 = vmatprep.subr.mxu0 0.0
        %303 = vmatpush1.msra.mxu0 0.0
        %304 = vmatprep.subr.mxu0 0.0
        %305 = vmatpush1.msra.mxu0 0.0
        %306 = vmatprep.subr.mxu0 0.0
        %307 = vmatpush1.msra.mxu0 0.0
        %308 = vmatprep.subr.mxu0 0.0
        %309 = vmatpush1.msra.mxu0 0.0
        %310 = vmatprep.subr.mxu0 0.0
        %311 = vmatpush1.msra.mxu0 0.0
        %312 = vmatprep.subr.mxu0 0.0
        %313 = vmatpush1.msra.mxu0 0.0
        %314 = vmatprep.subr.mxu0 0.0
        %315 = vmatpush1.msra.mxu0 0.0
        %316 = vmatprep.subr.mxu0 0.0
        %317 = vmatpush1.msra.mxu0 0.0
        %318 = vmatprep.subr.mxu0 0.0
        %319 = vmatpush1.msra.mxu0 0.0
        %320 = vmatprep.mubr.f32.mxu0 0.0
        %321 = vmatmul.mubr.f32.gmra.mrb[0].mxu0 %v251
        %v322 = vpop.f32.mrb[0].mxu0
        %v323 = vadd.f32 0.0, %v322
        %v324 = vpop.f32.mrb[0].mxu0
        %325 = vdwg.mxu0
        %v326 = vld [vmem:[%s2] sm:$0xf]
        %327 = vrot.lane.b32.xlu0 %v226, 2
        %v328 = vpop.permute.xlu0 %327
        %v329 = vadd.s32 %v231, 4294967294
        %vm330 = vcmp.ge.s32.totalorder %v329, 0
        %vm331 = vcmp.lt.s32.totalorder %v329, 128
        %vm332 = vmand %vm330, %vm331
        %v333 = vsel %vm332, %v328, 0.0
        %334 = vrot.lane.b32.xlu0 %v226, 126
        %v335 = vpop.permute.xlu0 %334
        %v336 = vadd.s32 %v231, 2
        %vm337 = vcmp.ge.s32.totalorder %v336, 0
        %vm338 = vcmp.lt.s32.totalorder %v336, 128
        %vm339 = vmand %vm337, %vm338
        %v340 = vsel %vm339, %v335, 0.0
        %v342 = vrot.slane %v236, 4
        %v344 = vrot.slane %v243, 4
        %v346 = vsel %vm247, %v333, %v342
        %v347 = vsel %vm247, %v226, %v344
        %vm348 = vcmask 162816
        %v350 = vsel %vm348, %v326, 0
        %v353 = vsel %vm247, %v340, 0
        %355 = vmatprep.subr.mxu0 0.0
        %356 = vmatpush1.msra.mxu0 %v346
        %357 = vmatprep.subr.mxu0 0.0
        %358 = vmatpush1.msra.mxu0 %v347
        %359 = vmatprep.subr.mxu0 0.0
        %360 = vmatpush1.msra.mxu0 %v353
        %361 = vmatprep.subr.mxu0 0.0
        %362 = vmatpush1.msra.mxu0 0.0
        %363 = vmatprep.subr.mxu0 0.0
        %364 = vmatpush1.msra.mxu0 0.0
        %365 = vmatprep.subr.mxu0 0.0
        %366 = vmatpush1.msra.mxu0 0.0
        %367 = vmatprep.subr.mxu0 0.0
        %368 = vmatpush1.msra.mxu0 0.0
        %369 = vmatprep.subr.mxu0 0.0
        %370 = vmatpush1.msra.mxu0 0.0
        %371 = vmatprep.subr.mxu0 0.0
        %372 = vmatpush1.msra.mxu0 0.0
        %373 = vmatprep.subr.mxu0 0.0
        %374 = vmatpush1.msra.mxu0 0.0
        %375 = vmatprep.subr.mxu0 0.0
        %376 = vmatpush1.msra.mxu0 0.0
        %377 = vmatprep.subr.mxu0 0.0
        %378 = vmatpush1.msra.mxu0 0.0
        %379 = vmatprep.subr.mxu0 0.0
        %380 = vmatpush1.msra.mxu0 0.0
        %381 = vmatprep.subr.mxu0 0.0
        %382 = vmatpush1.msra.mxu0 0.0
        %383 = vmatprep.subr.mxu0 0.0
        %384 = vmatpush1.msra.mxu0 0.0
        %385 = vmatprep.subr.mxu0 0.0
        %386 = vmatpush1.msra.mxu0 0.0
        %387 = vmatprep.subr.mxu0 0.0
        %388 = vmatpush1.msra.mxu0 0.0
        %389 = vmatprep.subr.mxu0 0.0
        %390 = vmatpush1.msra.mxu0 0.0
        %391 = vmatprep.subr.mxu0 0.0
        %392 = vmatpush1.msra.mxu0 0.0
        %393 = vmatprep.subr.mxu0 0.0
        %394 = vmatpush1.msra.mxu0 0.0
        %395 = vmatprep.subr.mxu0 0.0
        %396 = vmatpush1.msra.mxu0 0.0
        %397 = vmatprep.subr.mxu0 0.0
        %398 = vmatpush1.msra.mxu0 0.0
        %399 = vmatprep.subr.mxu0 0.0
        %400 = vmatpush1.msra.mxu0 0.0
        %401 = vmatprep.subr.mxu0 0.0
        %402 = vmatpush1.msra.mxu0 0.0
        %403 = vmatprep.subr.mxu0 0.0
        %404 = vmatpush1.msra.mxu0 0.0
        %405 = vmatprep.subr.mxu0 0.0
        %406 = vmatpush1.msra.mxu0 0.0
        %407 = vmatprep.subr.mxu0 0.0
        %408 = vmatpush1.msra.mxu0 0.0
        %409 = vmatprep.subr.mxu0 0.0
        %410 = vmatpush1.msra.mxu0 0.0
        %411 = vmatprep.subr.mxu0 0.0
        %412 = vmatpush1.msra.mxu0 0.0
        %413 = vmatprep.subr.mxu0 0.0
        %414 = vmatpush1.msra.mxu0 0.0
        %415 = vmatprep.subr.mxu0 0.0
        %416 = vmatpush1.msra.mxu0 0.0
        %417 = vmatprep.subr.mxu0 0.0
        %418 = vmatpush1.msra.mxu0 0.0
        %419 = vmatprep.mubr.f32.mxu0 0.0
        %420 = vmatmul.mubr.f32.gmra.mrb[0].mxu0 %v350
        %v421 = vpop.f32.mrb[0].mxu0
        %v422 = vadd.f32 0.0, %v421
        %v423 = vpop.f32.mrb[0].mxu0
        %424 = vdwg.mxu0
        %v426 = vrot.slane %v422, 4
        %v428 = vsel %vm247, %v323, %v426
        %v429 = vld [vmem:[%s3] sm:$0xf]
        %430 = vrot.lane.b32.xlu0 %v428, 3
        %v431 = vpop.permute.xlu0 %430
        %v432 = vadd.s32 %v231, 4294967293
        %vm433 = vcmp.ge.s32.totalorder %v432, 0
        %vm434 = vcmp.lt.s32.totalorder %v432, 128
        %vm435 = vmand %vm433, %vm434
        %v436 = vsel %vm435, %v431, 0.0
        %437 = vrot.lane.b32.xlu0 %v428, 2
        %v438 = vpop.permute.xlu0 %437
        %v439 = vsel %vm332, %v438, 0.0
        %440 = vrot.lane.b32.xlu0 %v428, 1
        %v441 = vpop.permute.xlu0 %440
        %v442 = vsel %vm235, %v441, 0.0
        %443 = vrot.lane.b32.xlu0 %v428, 127
        %v444 = vpop.permute.xlu0 %443
        %v445 = vsel %vm242, %v444, 0.0
        %446 = vrot.lane.b32.xlu0 %v428, 126
        %v447 = vpop.permute.xlu0 %446
        %v448 = vsel %vm339, %v447, 0.0
        %449 = vrot.lane.b32.xlu0 %v428, 125
        %v450 = vpop.permute.xlu0 %449
        %v451 = vadd.s32 %v231, 3
        %vm452 = vcmp.ge.s32.totalorder %v451, 0
        %vm453 = vcmp.lt.s32.totalorder %v451, 128
        %vm454 = vmand %vm452, %vm453
        %v455 = vsel %vm454, %v450, 0.0
        %vm456 = vcmask 457728
        %v458 = vsel %vm456, %v429, 0
        %460 = vmatprep.subr.mxu0 0.0
        %461 = vmatpush1.msra.mxu0 %v436
        %462 = vmatprep.subr.mxu0 0.0
        %463 = vmatpush1.msra.mxu0 %v439
        %464 = vmatprep.subr.mxu0 0.0
        %465 = vmatpush1.msra.mxu0 %v442
        %466 = vmatprep.subr.mxu0 0.0
        %467 = vmatpush1.msra.mxu0 %v428
        %468 = vmatprep.subr.mxu0 0.0
        %469 = vmatpush1.msra.mxu0 %v445
        %470 = vmatprep.subr.mxu0 0.0
        %471 = vmatpush1.msra.mxu0 %v448
        %472 = vmatprep.subr.mxu0 0.0
        %473 = vmatpush1.msra.mxu0 %v455
        %474 = vmatprep.subr.mxu0 0.0
        %475 = vmatpush1.msra.mxu0 0.0
        %476 = vmatprep.subr.mxu0 0.0
        %477 = vmatpush1.msra.mxu0 0.0
        %478 = vmatprep.subr.mxu0 0.0
        %479 = vmatpush1.msra.mxu0 0.0
        %480 = vmatprep.subr.mxu0 0.0
        %481 = vmatpush1.msra.mxu0 0.0
        %482 = vmatprep.subr.mxu0 0.0
        %483 = vmatpush1.msra.mxu0 0.0
        %484 = vmatprep.subr.mxu0 0.0
        %485 = vmatpush1.msra.mxu0 0.0
        %486 = vmatprep.subr.mxu0 0.0
        %487 = vmatpush1.msra.mxu0 0.0
        %488 = vmatprep.subr.mxu0 0.0
        %489 = vmatpush1.msra.mxu0 0.0
        %490 = vmatprep.subr.mxu0 0.0
        %491 = vmatpush1.msra.mxu0 0.0
        %492 = vmatprep.subr.mxu0 0.0
        %493 = vmatpush1.msra.mxu0 0.0
        %494 = vmatprep.subr.mxu0 0.0
        %495 = vmatpush1.msra.mxu0 0.0
        %496 = vmatprep.subr.mxu0 0.0
        %497 = vmatpush1.msra.mxu0 0.0
        %498 = vmatprep.subr.mxu0 0.0
        %499 = vmatpush1.msra.mxu0 0.0
        %500 = vmatprep.subr.mxu0 0.0
        %501 = vmatpush1.msra.mxu0 0.0
        %502 = vmatprep.subr.mxu0 0.0
        %503 = vmatpush1.msra.mxu0 0.0
        %504 = vmatprep.subr.mxu0 0.0
        %505 = vmatpush1.msra.mxu0 0.0
        %506 = vmatprep.subr.mxu0 0.0
        %507 = vmatpush1.msra.mxu0 0.0
        %508 = vmatprep.subr.mxu0 0.0
        %509 = vmatpush1.msra.mxu0 0.0
        %510 = vmatprep.subr.mxu0 0.0
        %511 = vmatpush1.msra.mxu0 0.0
        %512 = vmatprep.subr.mxu0 0.0
        %513 = vmatpush1.msra.mxu0 0.0
        %514 = vmatprep.subr.mxu0 0.0
        %515 = vmatpush1.msra.mxu0 0.0
        %516 = vmatprep.subr.mxu0 0.0
        %517 = vmatpush1.msra.mxu0 0.0
        %518 = vmatprep.subr.mxu0 0.0
        %519 = vmatpush1.msra.mxu0 0.0
        %520 = vmatprep.subr.mxu0 0.0
        %521 = vmatpush1.msra.mxu0 0.0
        %522 = vmatprep.subr.mxu0 0.0
        %523 = vmatpush1.msra.mxu0 0.0
        %524 = vmatprep.mubr.f32.mxu0 0.0
        %525 = vmatmul.mubr.f32.gmra.mrb[0].mxu0 %v458
        %v526 = vpop.f32.mrb[0].mxu0
        %v527 = vadd.f32 0.0, %v526
        %v528 = vpop.f32.mrb[0].mxu0
        %529 = vdwg.mxu0
        %v530 = vxor.u32 %v527, 2147483648
        %v531 = vmul.f32 %v530, 1.442695
        %v532 = vpow.pop %v531
        %v533 = vadd.f32 %v532, 1.0
        %v534 = vrcp.pop %v533
        %v535 = vmul.f32 1.0, %v534
        %v536 = vtanh.pop %v527
        %v537 = vmul.f32 %v535, %v536
        %v538 = vadd.f32 %v537, %v226
        %539 = vst [vmem:[%s225] sm:$0xf] %v538
        %s540 = sand.u32 %s119, 1
        %s541 = scalar_lea.sflag [#allocation4], %s540
        %s542 = sand.u32 %s119, 1
        %s543 = smul.addr %s542, 4
        %s544 = scalar_lea.vmem [#allocation7], %s543
        // Predicated region
        $region45: #{tpu_custom_call.1} parent=35 // pred_check
          %p545 = pneg %p129
        $region46: #{tpu_custom_call.1} parent=35 // pred_check_branch
          %547 = sbr.rel (%p545) target = $region48
        $region47: #{tpu_custom_call.1} parent=35 // pred_region
          %s549 = ssub.s32 64, 64
          %550 = vsyncadd %s541, %s549
          %s551 = smul.addr %s22, 64
          %s552 = scalar_lea.hbm %s4, %s551
          %s554 = sshll.u32 %s544, 4
          %s555 = int_to_ptr.vmem [resolvable:$true] %s554
          %557 = dma.vmem_to_hbm [thread:$0]  %s555, 64, %s552, %s541
        $region48: #{tpu_custom_call.1} parent=35 // pred_fallthru
          _
      $region36: #{tpu_custom_call.1} parent=5 // pred_fallthru
        _
      %p558 = scmp.le.s32.totalorder 2, %s17
      // Predicated region
      $region49: #{tpu_custom_call.1} parent=5 // pred_check
        %p559 = pneg %p558
      $region50: #{tpu_custom_call.1} parent=5 // pred_check_branch
        %561 = sbr.rel (%p559) target = $region52
      $region51: #{tpu_custom_call.1} parent=5 // pred_region
        %s562 = ssub.s32 %s17, 2
        // Predicated region
        $region53: #{tpu_custom_call.1} parent=51 // pred_check
          %p563 = pneg %p135
        $region54: #{tpu_custom_call.1} parent=51 // pred_check_branch
          %565 = sbr.rel (%p563) target = $region56
        $region55: #{tpu_custom_call.1} parent=51 // pred_region
          %s566 = sand.u32 %s120, 1
          %s567 = scalar_lea.sflag [#allocation4], %s566
          %s568 = sand.u32 %s120, 1
          %s569 = smul.addr %s568, 4
          %s570 = scalar_lea.vmem [#allocation7], %s569
          %571 = dma.done %s567, 64
        $region56: #{tpu_custom_call.1} parent=51 // pred_fallthru
          _
      $region52: #{tpu_custom_call.1} parent=5 // pred_fallthru
        _
    $region6: #{tpu_custom_call.1} parent=1 // loop_footer
      %s21 = sadd.s32 1, %s17
    $region7: #{tpu_custom_call.1} parent=1 // loop_footer_branch
      %16 = sbr.rel target = $region3
    $region8: #{tpu_custom_call.1} parent=1 // loop_exit
      _
    %572 = vsyncpa [#allocation3], 1
    %s573 = scalar_lea.sflag [#allocation3], 1
    %574 = vsyncpa %s573, 1
    %575 = vsyncpa [#allocation6], 1
    %576 = vsyncpa [#allocation4], 1
    %s577 = scalar_lea.sflag [#allocation4], 1
    %578 = vsyncpa %s577, 1

</llo_original>
